<compile_context>
chip_gen: v7x
topology: tpu7x:2x2x1
jax: 0.10.0
libtpu: 0.0.40
codegen_flags: <defaults>
</compile_context>

<pallas_src>
import jax
import jax.numpy as jnp
from jax.experimental import pallas as pl
from jax.experimental.pallas import tpu as pltpu


# ----------------------------------------------------------------------------
# Hardware-aware budgets
# ----------------------------------------------------------------------------
def _hw_budgets():
    """Returns (weight_tile_budget_bytes, vmem_limit_cap_bytes), per generation."""
    cap = 128 << 20
    try:
        cap = int(pltpu.get_tpu_info().vmem_capacity_bytes)
    except Exception:
        pass
    if cap <= (64 << 20):            # v7x: 64 MiB VMEM per TC -> leave headroom
        return 20 << 20, 48 << 20
    return 56 << 20, 100 << 20       # v5e / v6e: 128 MiB physical VMEM


def choose_step_tile(E, R, weight_dtype=jnp.bfloat16):
    """Largest tn in {1024,512,256,128} dividing R whose double-buffered fused
    weight slab (2 * K * 5*tn bytes) fits the generation-aware budget."""
    K = E + R
    wbytes = jnp.dtype(weight_dtype).itemsize
    budget, _ = _hw_budgets()
    divisors = [tn for tn in (1024, 512, 256, 128) if R % tn == 0]
    for tn in divisors:
        if 2 * K * 5 * tn * wbytes <= budget:
            return tn
    if divisors:
        return divisors[-1]
    return R   # R not a multiple of 128: single full-width block


# ----------------------------------------------------------------------------
# Parameters (PyTorch nn.Linear-style init), packed for the kernels
# ----------------------------------------------------------------------------
def init_params(key, input_encoding_size, rnn_size, weight_dtype=jnp.bfloat16):
    """Returns dict(wx=[E,5R], wh=[R,5R] (weight_dtype), b=[1,5R] f32).

    Gate column order matches the module: [in | forget | out | t1 | t2]*R.
    """
    E, R = input_encoding_size, rnn_size
    k1, k2, k3, k4 = jax.random.split(key, 4)
    bi = 1.0 / jnp.sqrt(jnp.float32(E))
    bh = 1.0 / jnp.sqrt(jnp.float32(R))
    w_i2h = jax.random.uniform(k1, (5 * R, E), jnp.float32, -bi, bi)
    b_i2h = jax.random.uniform(k2, (5 * R,), jnp.float32, -bi, bi)
    w_h2h = jax.random.uniform(k3, (5 * R, R), jnp.float32, -bh, bh)
    b_h2h = jax.random.uniform(k4, (5 * R,), jnp.float32, -bh, bh)
    return {
        "wx": w_i2h.T.astype(weight_dtype),           # [E, 5R]
        "wh": w_h2h.T.astype(weight_dtype),           # [R, 5R]
        "b": (b_i2h + b_h2h)[None, :].astype(jnp.float32),   # [1, 5R]
    }


def pack_step_weights(params, tn):
    """Repack fused [K,5R] weights into contiguous per-tile slabs.

    Returns wt [R//tn, K, 5*tn] (weight dtype) and bt [R//tn, 1, 5*tn] (f32):
    tile j holds output columns j*tn:(j+1)*tn of all 5 gates, gate-major along
    lanes, so each grid step is one contiguous DMA + one fused dot.
    """
    wx, wh, b = params["wx"], params["wh"], params["b"]
    E, five_r = wx.shape
    R = five_r // 5
    K = E + R
    nt = max(R // tn, 1)
    wc = jnp.concatenate([wx, wh], axis=0)                          # [K, 5R]
    wt = wc.reshape(K, 5, nt, tn).transpose(2, 0, 1, 3).reshape(nt, K, 5 * tn)
    bt = b.reshape(1, 5, nt, tn).transpose(2, 0, 1, 3).reshape(nt, 1, 5 * tn)
    return wt, bt


# ----------------------------------------------------------------------------
# Single-step kernel (exact LSTMCore.forward)
# ----------------------------------------------------------------------------
def _lstm_step_kernel(xc_ref, c_ref, w_ref, b_ref, h_out_ref, c_out_ref):
    tn = h_out_ref.shape[-1]
    # One fused matmul per tile: [B,K] @ [K,5*tn], f32 MXU accumulation.
    s = jnp.dot(xc_ref[...], w_ref[0],
                preferred_element_type=jnp.float32) + b_ref[0]       # [B, 5*tn]
    in_gate = jax.nn.sigmoid(s[:, 0 * tn:1 * tn])
    forget_gate = jax.nn.sigmoid(s[:, 1 * tn:2 * tn])
    out_gate = jax.nn.sigmoid(s[:, 2 * tn:3 * tn])
    in_transform = jnp.maximum(s[:, 3 * tn:4 * tn], s[:, 4 * tn:5 * tn])

    # All gate math in f32 (v5e-safe); cell state stays f32.
    next_c = forget_gate * c_ref[...].astype(jnp.float32) + in_gate * in_transform
    next_h = out_gate * jnp.tanh(next_c)

    h_out_ref[...] = next_h.astype(h_out_ref.dtype)
    c_out_ref[...] = next_c


def lstm_core_forward(xt, state, wt, bt, *, rnn_size, donate_state=False):
    """Pallas equivalent of LSTMCore.forward(xt, state) in eval mode.

    wt/bt come from pack_step_weights(). Returns (output, (next_h[1,B,R],
    next_c[1,B,R])); next_c is f32 unconditionally.
    """
    h_prev = state[0][-1]
    c_prev = state[1][-1].astype(jnp.float32)
    B, E = xt.shape
    R = rnn_size
    nt, K, five_tn = wt.shape
    tn = five_tn // 5
    assert nt * tn == R and K == E + R

    xc = jnp.concatenate([xt, h_prev], axis=1).astype(wt.dtype)      # [B, K]

    wbytes = jnp.dtype(wt.dtype).itemsize
    xbytes = jnp.dtype(xc.dtype).itemsize
    _, cap = _hw_budgets()
    est = (2 * K * 5 * tn * wbytes                  # weight tiles (dbl-buffered)
           + 2 * (B * K * xbytes + B * tn * 4 + 5 * tn * 4 + 2 * B * tn * 4))
    vmem_limit = int(min(max(int(1.25 * est), 16 << 20), cap))

    cost = pl.CostEstimate(
        flops=2 * B * K * 5 * R,
        transcendentals=4 * B * R,
        bytes_accessed=K * 5 * R * wbytes + B * K * xbytes + 4 * B * R * 4 + 5 * R * 4,
    )

    aliases = {}
    if donate_state and state[1][-1].dtype == jnp.float32:
        aliases = {1: 1}   # reuse c_prev's buffer for next_c

    out_h, out_c = pl.pallas_call(
        _lstm_step_kernel,
        out_shape=(jax.ShapeDtypeStruct((B, R), xt.dtype),
                   jax.ShapeDtypeStruct((B, R), jnp.float32)),
        grid_spec=pltpu.PrefetchScalarGridSpec(
            num_scalar_prefetch=0,
            grid=(nt,),
            in_specs=[
                pl.BlockSpec((B, K), lambda j: (0, 0)),              # xc (resident)
                pl.BlockSpec((B, tn), lambda j: (0, j)),             # c tile
                pl.BlockSpec((1, K, 5 * tn), lambda j: (j, 0, 0)),   # weight slab
                pl.BlockSpec((1, 1, 5 * tn), lambda j: (j, 0, 0)),   # bias slab
            ],
            out_specs=(pl.BlockSpec((B, tn), lambda j: (0, j)),
                       pl.BlockSpec((B, tn), lambda j: (0, j))),
        ),
        compiler_params=pltpu.CompilerParams(
            dimension_semantics=("parallel",),
            vmem_limit_bytes=vmem_limit,
        ),
        cost_estimate=cost,
        input_output_aliases=aliases,
    )(xc, c_prev, wt, bt)

    # Dropout is identity in eval mode -> output is next_h itself.
    return out_h, (out_h[None, ...], out_c[None, ...])


# ----------------------------------------------------------------------------
# Fused multi-timestep kernel: weights VMEM-resident across all T steps
# ----------------------------------------------------------------------------
def _lstm_scan_kernel(x_ref, h0_ref, c0_ref, wx_ref, wh_ref, b_ref,
                      hseq_ref, hlast_ref, clast_ref, h_scr, c_scr):
    t = pl.program_id(0)
    R = h_scr.shape[-1]

    @pl.when(t == 0)
    def _():
        h_scr[...] = h0_ref[...].astype(jnp.float32)
        c_scr[...] = c0_ref[...].astype(jnp.float32)

    xt = x_ref[0]                                   # [B, E]
    h_prev = h_scr[...]                             # [B, R] f32

    s = (jnp.dot(xt.astype(wx_ref.dtype), wx_ref[...],
                 preferred_element_type=jnp.float32)
         + jnp.dot(h_prev.astype(wh_ref.dtype), wh_ref[...],
                   preferred_element_type=jnp.float32)
         + b_ref[...])                               # [B, 5R] f32

    in_gate = jax.nn.sigmoid(s[:, 0 * R:1 * R])
    forget_gate = jax.nn.sigmoid(s[:, 1 * R:2 * R])
    out_gate = jax.nn.sigmoid(s[:, 2 * R:3 * R])
    in_transform = jnp.maximum(s[:, 3 * R:4 * R], s[:, 4 * R:5 * R])

    next_c = forget_gate * c_scr[...] + in_gate * in_transform
    next_h = out_gate * jnp.tanh(next_c)

    h_scr[...] = next_h
    c_scr[...] = next_c
    hseq_ref[0] = next_h.astype(hseq_ref.dtype)
    hlast_ref[...] = next_h.astype(hlast_ref.dtype)
    clast_ref[...] = next_c                          # f32


def lstm_core_scan(xs, state, params):
    """Run LSTMCore over xs[T,B,E] with one pallas_call; weights stay in VMEM
    for all T steps, h/c carried in VMEM scratch, only xt DMA'd per step.

    Returns (h_seq [T,B,R], (h_last[1,B,R], c_last[1,B,R] f32)).
    """
    wx, wh, b = params["wx"], params["wh"], params["b"]
    T, B, E = xs.shape
    R = wh.shape[0]
    h0 = state[0][-1]
    c0 = state[1][-1].astype(jnp.float32)

    wbytes = jnp.dtype(wx.dtype).itemsize
    weight_bytes = (E + R) * 5 * R * wbytes
    budget, cap = _hw_budgets()

    if 2 * weight_bytes > budget:
        # Weights too large to hold resident: fall back to the tiled per-step
        # kernel (weights streamed each step).
        tn = choose_step_tile(E, R, wx.dtype)
        wt, bt = pack_step_weights(params, tn)
        st = state
        hs = []
        for t in range(T):
            h, st = lstm_core_forward(xs[t], st, wt, bt, rnn_size=R)
            hs.append(h)
        return jnp.stack(hs, 0), st

    xbytes = jnp.dtype(xs.dtype).itemsize
    est = (2 * weight_bytes                 # wx + wh
           + 2 * 5 * R * 4                  # bias
           + 2 * B * E * xbytes             # per-step xt block
           + 2 * 2 * B * R * 4              # h0, c0
           + 2 * (2 * B * R * xbytes + B * R * 4)   # hseq/hlast/clast blocks
           + 2 * B * R * 4)                 # h/c scratch
    vmem_limit = int(min(max(int(1.25 * est), 16 << 20), cap))

    cost = pl.CostEstimate(
        flops=2 * T * B * (E + R) * 5 * R,
        transcendentals=4 * T * B * R,
        bytes_accessed=weight_bytes + T * B * E * xbytes + 2 * T * B * R * xbytes,
    )

    h_seq, h_last, c_last = pl.pallas_call(
        _lstm_scan_kernel,
        out_shape=(jax.ShapeDtypeStruct((T, B, R), xs.dtype),
                   jax.ShapeDtypeStruct((B, R), xs.dtype),
                   jax.ShapeDtypeStruct((B, R), jnp.float32)),
        grid_spec=pltpu.PrefetchScalarGridSpec(
            num_scalar_prefetch=0,
            grid=(T,),
            in_specs=[
                pl.BlockSpec((1, B, E), lambda t: (t, 0, 0)),    # xt per step
                pl.BlockSpec((B, R), lambda t: (0, 0)),          # h0 (t==0)
                pl.BlockSpec((B, R), lambda t: (0, 0)),          # c0 (t==0)
                pl.BlockSpec((E, 5 * R), lambda t: (0, 0)),      # Wx resident
                pl.BlockSpec((R, 5 * R), lambda t: (0, 0)),      # Wh resident
                pl.BlockSpec((1, 5 * R), lambda t: (0, 0)),      # bias resident
            ],
            out_specs=(pl.BlockSpec((1, B, R), lambda t: (t, 0, 0)),
                       pl.BlockSpec((B, R), lambda t: (0, 0)),
                       pl.BlockSpec((B, R), lambda t: (0, 0))),
            scratch_shapes=[pltpu.VMEM((B, R), jnp.float32),     # h carry
                            pltpu.VMEM((B, R), jnp.float32)],    # c carry
        ),
        compiler_params=pltpu.CompilerParams(
            dimension_semantics=("arbitrary",),   # time carry -> sequential
            vmem_limit_bytes=vmem_limit,
        ),
        cost_estimate=cost,
    )(xs, h0, c0, wx, wh, b)

    return h_seq, (h_last[None, ...], c_last[None, ...])


# ----------------------------------------------------------------------------
# Pure-JAX references (same numerics: bf16 weights, f32 accumulate/gates)
# ----------------------------------------------------------------------------
def reference_forward(xt, state, params, rnn_size):
    wx, wh, b = params["wx"], params["wh"], params["b"]
    R = rnn_size
    h = state[0][-1]
    c = state[1][-1].astype(jnp.float32)
    s = (jnp.dot(xt.astype(wx.dtype), wx, preferred_element_type=jnp.float32)
         + jnp.dot(h.astype(wh.dtype), wh, preferred_element_type=jnp.float32)
         + b)
    ig = jax.nn.sigmoid(s[:, :R])
    fg = jax.nn.sigmoid(s[:, R:2 * R])
    og = jax.nn.sigmoid(s[:, 2 * R:3 * R])
    it = jnp.maximum(s[:, 3 * R:4 * R], s[:, 4 * R:5 * R])
    nc = fg * c + ig * it
    nh = (og * jnp.tanh(nc)).astype(xt.dtype)
    return nh, (nh[None], nc[None])


def reference_scan(xs, state, params, rnn_size):
    def step(carry, xt):
        h, c = carry
        out, (nh, nc) = reference_forward(xt, (h[None], c[None]), params, rnn_size)
        return (nh[0], nc[0]), out
    init = (state[0][-1], state[1][-1].astype(jnp.float32))
    (h, c), ys = jax.lax.scan(step, init, xs)
    return ys, (h[None], c[None])


# ----------------------------------------------------------------------------
if __name__ == "__main__":
    B, E, R, T = 8, 64, 128, 6   # batch, input_encoding_size, rnn_size, steps

    key = jax.random.PRNGKey(0)
    kx, ks, kh, kc, kp = jax.random.split(key, 5)
    xt = jax.random.normal(kx, (B, E), jnp.float32)
    xs = jax.random.normal(ks, (T, B, E), jnp.float32)
    h0 = jax.random.normal(kh, (1, B, R), jnp.float32)
    c0 = jax.random.normal(kc, (1, B, R), jnp.float32)
    state = (h0, c0)

    params = init_params(kp, E, R)

    # --- single step: exact LSTMCore.forward semantics -----------------------
    tn = choose_step_tile(E, R, params["wx"].dtype)
    wt, bt = pack_step_weights(params, tn)
    output, new_state = lstm_core_forward(xt, state, wt, bt, rnn_size=R)
    output = jax.block_until_ready(output)
    new_state = jax.tree_util.tree_map(jax.block_until_ready, new_state)

    ref_out, ref_state = reference_forward(xt, state, params, R)
    assert output.shape == (B, R)
    assert new_state[0].shape == (1, B, R) and new_state[1].shape == (1, B, R)
    assert new_state[1].dtype == jnp.float32          # cell state stays f32
    assert jnp.allclose(output, ref_out, atol=2e-3, rtol=2e-3)
    assert jnp.allclose(new_state[0], ref_state[0], atol=2e-3, rtol=2e-3)
    assert jnp.allclose(new_state[1], ref_state[1], atol=2e-3, rtol=2e-3)

    # --- fused T-step scan: weights VMEM-resident across time ---------------
    h_seq, scan_state = lstm_core_scan(xs, state, params)
    h_seq = jax.block_until_ready(h_seq)
    scan_state = jax.tree_util.tree_map(jax.block_until_ready, scan_state)

    ref_seq, ref_scan_state = reference_scan(xs, state, params, R)
    assert h_seq.shape == (T, B, R)
    assert scan_state[1].dtype == jnp.float32
    assert jnp.allclose(h_seq, ref_seq, atol=3e-3, rtol=3e-3)
    assert jnp.allclose(scan_state[0], ref_scan_state[0], atol=3e-3, rtol=3e-3)
    assert jnp.allclose(scan_state[1], ref_scan_state[1], atol=3e-3, rtol=3e-3)

    print("KERNEL_OK")
</pallas_src>

<mosaic_0001>
module attributes {stable_mosaic.version = 11 : i64} {
  func.func @_lstm_step_kernel(%arg0: i32, %arg1: memref<8x192xbf16, #tpu.memory_space<vmem>>, %arg2: memref<8x128xf32, #tpu.memory_space<vmem>>, %arg3: memref<1x192x640xbf16, #tpu.memory_space<vmem>>, %arg4: memref<1x1x640xf32, #tpu.memory_space<vmem>>, %arg5: memref<8x128xf32, #tpu.memory_space<vmem>>, %arg6: memref<8x128xf32, #tpu.memory_space<vmem>>) attributes {dimension_semantics = [#tpu.dimension_semantics<parallel>], iteration_bounds = array<i64: 1>, scalar_prefetch = 0 : i64, scratch_operands = 0 : i64, tpu.core_type = #tpu.core_type<tc>, window_params = [{pipeline_mode = #tpu.pipeline_mode<synchronous>, transform_indices = @transform_0, window_bounds = array<i64: 8, 192>}, {transform_indices = @transform_1, window_bounds = array<i64: 8, 128>}, {transform_indices = @transform_2, window_bounds = array<i64: 1, 192, 640>}, {transform_indices = @transform_3, window_bounds = array<i64: 1, 1, 640>}, {transform_indices = @transform_4, window_bounds = array<i64: 8, 128>}, {transform_indices = @transform_5, window_bounds = array<i64: 8, 128>}]} {
    %c0 = arith.constant 0 : index
    %c0_0 = arith.constant 0 : index
    %0 = vector.load %arg1[%c0, %c0_0] : memref<8x192xbf16, #tpu.memory_space<vmem>>, vector<8x192xbf16>
    %c0_1 = arith.constant 0 : index
    %c0_2 = arith.constant 0 : index
    %c0_3 = arith.constant 0 : index
    %1 = vector.load %arg3[%c0_1, %c0_2, %c0_3] : memref<1x192x640xbf16, #tpu.memory_space<vmem>>, vector<1x192x640xbf16>
    %2 = vector.shape_cast %1 : vector<1x192x640xbf16> to vector<192x640xbf16>
    %cst = arith.constant dense<0.000000e+00> : vector<8x640xf32>
    %3 = tpu.matmul %0, %2, %cst {dimension_numbers = #tpu.dot_dimension_numbers<[1], [0], [0], [1], [0, 0, 1, 1], [], []>} : vector<8x192xbf16>, vector<192x640xbf16>, vector<8x640xf32> -> vector<8x640xf32>
    %c0_4 = arith.constant 0 : index
    %c0_5 = arith.constant 0 : index
    %c0_6 = arith.constant 0 : index
    %4 = vector.load %arg4[%c0_4, %c0_5, %c0_6] : memref<1x1x640xf32, #tpu.memory_space<vmem>>, vector<1x1x640xf32>
    %5 = vector.shape_cast %4 : vector<1x1x640xf32> to vector<1x640xf32>
    %6 = vector.broadcast %5 : vector<1x640xf32> to vector<8x640xf32>
    %7 = arith.addf %3, %6 : vector<8x640xf32>
    %8 = vector.extract_strided_slice %7 {offsets = [0, 0], sizes = [8, 128], strides = [1, 1]} : vector<8x640xf32> to vector<8x128xf32>
    %9 = arith.negf %8 : vector<8x128xf32>
    %10 = math.exp %9 : vector<8x128xf32>
    %cst_7 = arith.constant 1.000000e+00 : f32
    %11 = vector.broadcast %cst_7 : f32 to vector<8x128xf32>
    %12 = arith.addf %11, %10 : vector<8x128xf32>
    %13 = arith.divf %11, %12 : vector<8x128xf32>
    %14 = vector.extract_strided_slice %7 {offsets = [0, 128], sizes = [8, 128], strides = [1, 1]} : vector<8x640xf32> to vector<8x128xf32>
    %15 = arith.negf %14 : vector<8x128xf32>
    %16 = math.exp %15 : vector<8x128xf32>
    %cst_8 = arith.constant 1.000000e+00 : f32
    %17 = vector.broadcast %cst_8 : f32 to vector<8x128xf32>
    %18 = arith.addf %17, %16 : vector<8x128xf32>
    %19 = arith.divf %17, %18 : vector<8x128xf32>
    %20 = vector.extract_strided_slice %7 {offsets = [0, 256], sizes = [8, 128], strides = [1, 1]} : vector<8x640xf32> to vector<8x128xf32>
    %21 = arith.negf %20 : vector<8x128xf32>
    %22 = math.exp %21 : vector<8x128xf32>
    %cst_9 = arith.constant 1.000000e+00 : f32
    %23 = vector.broadcast %cst_9 : f32 to vector<8x128xf32>
    %24 = arith.addf %23, %22 : vector<8x128xf32>
    %25 = arith.divf %23, %24 : vector<8x128xf32>
    %26 = vector.extract_strided_slice %7 {offsets = [0, 384], sizes = [8, 128], strides = [1, 1]} : vector<8x640xf32> to vector<8x128xf32>
    %27 = vector.extract_strided_slice %7 {offsets = [0, 512], sizes = [8, 128], strides = [1, 1]} : vector<8x640xf32> to vector<8x128xf32>
    %28 = arith.maximumf %26, %27 : vector<8x128xf32>
    %c0_10 = arith.constant 0 : index
    %c0_11 = arith.constant 0 : index
    %29 = vector.load %arg2[%c0_10, %c0_11] : memref<8x128xf32, #tpu.memory_space<vmem>>, vector<8x128xf32>
    %30 = arith.mulf %19, %29 : vector<8x128xf32>
    %31 = arith.mulf %13, %28 : vector<8x128xf32>
    %32 = arith.addf %30, %31 : vector<8x128xf32>
    %33 = math.tanh %32 : vector<8x128xf32>
    %34 = arith.mulf %25, %33 : vector<8x128xf32>
    %c0_12 = arith.constant 0 : index
    %c0_13 = arith.constant 0 : index
    %35 = vector.load %arg5[%c0_12, %c0_13] : memref<8x128xf32, #tpu.memory_space<vmem>>, vector<8x128xf32>
    tpu.vector_store %arg5[%c0_12, %c0_13], %34 {strides = array<i32>} : memref<8x128xf32, #tpu.memory_space<vmem>>, vector<8x128xf32>,
    %c0_14 = arith.constant 0 : index
    %c0_15 = arith.constant 0 : index
    %36 = vector.load %arg6[%c0_14, %c0_15] : memref<8x128xf32, #tpu.memory_space<vmem>>, vector<8x128xf32>
    tpu.vector_store %arg6[%c0_14, %c0_15], %32 {strides = array<i32>} : memref<8x128xf32, #tpu.memory_space<vmem>>, vector<8x128xf32>,
    return
  }
  func.func @transform_0(%arg0: i32) -> (i32, i32) {
    %c0_i32 = arith.constant 0 : i32
    %c0_i32_0 = arith.constant 0 : i32
    %c0_i32_1 = arith.constant 0 : i32
    return %c0_i32, %c0_i32_0 : i32, i32
  }
  func.func @transform_1(%arg0: i32) -> (i32, i32) {
    %c0_i32 = arith.constant 0 : i32
    %c0_i32_0 = arith.constant 0 : i32
    return %c0_i32, %arg0 : i32, i32
  }
  func.func @transform_2(%arg0: i32) -> (i32, i32, i32) {
    %c0_i32 = arith.constant 0 : i32
    %c0_i32_0 = arith.constant 0 : i32
    %c0_i32_1 = arith.constant 0 : i32
    return %arg0, %c0_i32, %c0_i32_0 : i32, i32, i32
  }
  func.func @transform_3(%arg0: i32) -> (i32, i32, i32) {
    %c0_i32 = arith.constant 0 : i32
    %c0_i32_0 = arith.constant 0 : i32
    %c0_i32_1 = arith.constant 0 : i32
    return %arg0, %c0_i32, %c0_i32_0 : i32, i32, i32
  }
  func.func @transform_4(%arg0: i32) -> (i32, i32) {
    %c0_i32 = arith.constant 0 : i32
    %c0_i32_0 = arith.constant 0 : i32
    return %c0_i32, %arg0 : i32, i32
  }
  func.func @transform_5(%arg0: i32) -> (i32, i32) {
    %c0_i32 = arith.constant 0 : i32
    %c0_i32_0 = arith.constant 0 : i32
    return %c0_i32, %arg0 : i32, i32
  }
}

</mosaic_0001>

<llo_original>
// kernel: tpu_custom_call.1
$region0: #{tpu_custom_call.1}
  #allocation0 [shape = 'u32[]', space=smem, size = 0x4, offset = 0x4, fixed_abs, tag = 'smem constant byte address 0x4 - core index']
  #allocation1 [shape = 'u32[144,128]{1,0:T(1,128)}', space=vmem, size = 0x12000, scoped, tag = 'internal scratch']
  %s0 = inlined_call_operand.hbm [shape: bf16[8,192], index: 0, kind: input, shape index: {}]
  %s1 = inlined_call_operand.hbm [shape: f32[8,128], index: 1, kind: input, shape index: {}]
  %s2 = inlined_call_operand.hbm [shape: bf16[1,192,640], index: 2, kind: input, shape index: {}]
  %s3 = inlined_call_operand.vmem [shape: f32[1,1,640], index: 3, kind: input, shape index: {}]
  %s4 = inlined_call_operand.hbm [shape: f32[8,128], index: 4, kind: output, shape index: {0}]
  %s5 = inlined_call_operand.hbm [shape: f32[8,128], index: 5, kind: output, shape index: {1}]
  %6 = xla_tuple %s4, %s5
  %s7 = sld [smem:[#allocation0]]
  $region46: #{tpu_custom_call.1} parent=0
    _
  %s9 = ssub.s32 1, %s7
  %s10 = scalar_select 0, %s9, %s7
  $region1: #{tpu_custom_call.1} parent=0
    #allocation2 [shape = 'u8[4096]{0}', space=vmem, size = 0x1000, scoped, tag = 'input window, operand 0, single buffered']
    #allocation3 [shape = 's32[1]{0}', space=sflag, size = 0x4, scoped, tag = 'scoped memory for tpu_custom_call.1']
    #allocation4 [shape = 's32[1]{0}', space=sflag, size = 0x4, scoped, tag = 'scoped memory for tpu_custom_call.1']
    #allocation5 [shape = 'u8[4096]{0}', space=vmem, size = 0x1000, scoped, tag = 'input window, operand 1, single buffered']
    #allocation6 [shape = 's32[1]{0}', space=sflag, size = 0x4, scoped, tag = 'scoped memory for tpu_custom_call.1']
    #allocation7 [shape = 'u8[245760]{0}', space=vmem, size = 0x3c000, scoped, tag = 'input window, operand 2, single buffered']
    #allocation8 [shape = 'u8[4096]{0}', space=vmem, size = 0x1000, scoped, tag = 'output window, operand 0, single buffered']
    #allocation9 [shape = 'u8[4096]{0}', space=vmem, size = 0x1000, scoped, tag = 'output window, operand 1, single buffered']
    #allocation10 [shape = 's32[1]{0}', space=sflag, size = 0x4, scoped, tag = 'scoped memory for tpu_custom_call.1']
    %11 = vsyncpa [#allocation3], 0
    %12 = vsyncpa [#allocation6], 0
    %13 = vsyncpa [#allocation4], 0
    %14 = vsyncpa [#allocation10], 0
    // Predicated region
    $region2: #{tpu_custom_call.1} parent=1 // pred_check
      _
    $region3: #{tpu_custom_call.1} parent=1 // pred_check_branch
      %16 = sbr.rel (0) target = $region5
    $region4: #{tpu_custom_call.1} parent=1 // pred_region
      %s18 = ssub.s32 128, 128
      %19 = vsyncadd [#allocation3], %s18
      %s21 = sshll.u32 [#allocation2], 4
      %s22 = int_to_ptr.vmem [resolvable:$true] %s21
      %24 = dma.hbm_to_vmem [thread:$0]  %s0, 128, %s22, [#allocation3]
    $region5: #{tpu_custom_call.1} parent=1 // pred_fallthru
      _
    // Predicated region
    $region6: #{tpu_custom_call.1} parent=1 // pred_check
      _
    $region7: #{tpu_custom_call.1} parent=1 // pred_check_branch
      %26 = sbr.rel (0) target = $region9
    $region8: #{tpu_custom_call.1} parent=1 // pred_region
      %s28 = ssub.s32 128, 128
      %29 = vsyncadd [#allocation6], %s28
      %s31 = sshll.u32 [#allocation5], 4
      %s32 = int_to_ptr.vmem [resolvable:$true] %s31
      %34 = dma.hbm_to_vmem [thread:$0]  %s1, 128, %s32, [#allocation6]
    $region9: #{tpu_custom_call.1} parent=1 // pred_fallthru
      _
    // Predicated region
    $region10: #{tpu_custom_call.1} parent=1 // pred_check
      _
    $region11: #{tpu_custom_call.1} parent=1 // pred_check_branch
      %36 = sbr.rel (0) target = $region13
    $region12: #{tpu_custom_call.1} parent=1 // pred_region
      %s38 = ssub.s32 7680, 7680
      %39 = vsyncadd [#allocation6], %s38
      %s40 = sshll.u32 [#allocation7], 4
      %s41 = int_to_ptr.vmem [resolvable:$true] %s40
      %46 = dma.hbm_to_vmem [thread:$0]  %s2, 7680, %s41, [#allocation6], 320, 320, 20
    $region13: #{tpu_custom_call.1} parent=1 // pred_fallthru
      _
    // Predicated region
    $region14: #{tpu_custom_call.1} parent=1 // pred_check
      _
    $region15: #{tpu_custom_call.1} parent=1 // pred_check_branch
      %48 = sbr.rel (0) target = $region17
    $region16: #{tpu_custom_call.1} parent=1 // pred_region
      _
    $region17: #{tpu_custom_call.1} parent=1 // pred_fallthru
      _
    // Predicated region
    $region18: #{tpu_custom_call.1} parent=1 // pred_check
      _
    $region19: #{tpu_custom_call.1} parent=1 // pred_check_branch
      %50 = sbr.rel (0) target = $region21
    $region20: #{tpu_custom_call.1} parent=1 // pred_region
      %51 = dma.done [#allocation3], 128
    $region21: #{tpu_custom_call.1} parent=1 // pred_fallthru
      _
    // Predicated region
    $region22: #{tpu_custom_call.1} parent=1 // pred_check
      _
    $region23: #{tpu_custom_call.1} parent=1 // pred_check_branch
      %53 = sbr.rel (0) target = $region25
    $region24: #{tpu_custom_call.1} parent=1 // pred_region
      %54 = dma.done [#allocation6], 128
    $region25: #{tpu_custom_call.1} parent=1 // pred_fallthru
      _
    // Predicated region
    $region26: #{tpu_custom_call.1} parent=1 // pred_check
      _
    $region27: #{tpu_custom_call.1} parent=1 // pred_check_branch
      %56 = sbr.rel (0) target = $region29
    $region28: #{tpu_custom_call.1} parent=1 // pred_region
      %57 = dma.done [#allocation6], 7680
    $region29: #{tpu_custom_call.1} parent=1 // pred_fallthru
      _
    %v59 = vld [vmem:[#allocation2] sm:$0xff]
    %v60 = vld [vmem:[#allocation7] sm:$0xff]
    %v61 = vld [vmem:[#allocation7 + $0x8] sm:$0xff]
    %v62 = vld [vmem:[#allocation7 + $0x10] sm:$0xf]
    %v63 = vld [vmem:[#allocation7 + $0x14] sm:$0xff]
    %v64 = vld [vmem:[#allocation7 + $0x1c] sm:$0xff]
    %v65 = vld [vmem:[#allocation7 + $0x24] sm:$0xf]
    %v66 = vld [vmem:[#allocation7 + $0x28] sm:$0xff]
    %v67 = vld [vmem:[#allocation7 + $0x30] sm:$0xff]
    %v68 = vld [vmem:[#allocation7 + $0x38] sm:$0xf]
    %v69 = vld [vmem:[#allocation7 + $0x3c] sm:$0xff]
    %v70 = vld [vmem:[#allocation7 + $0x44] sm:$0xff]
    %v71 = vld [vmem:[#allocation7 + $0x4c] sm:$0xf]
    %v72 = vld [vmem:[#allocation7 + $0x50] sm:$0xff]
    %v73 = vld [vmem:[#allocation7 + $0x58] sm:$0xff]
    %v74 = vld [vmem:[#allocation7 + $0x60] sm:$0xf]
    %v75 = vld [vmem:[#allocation7 + $0x64] sm:$0xff]
    %v76 = vld [vmem:[#allocation7 + $0x6c] sm:$0xff]
    %v77 = vld [vmem:[#allocation7 + $0x74] sm:$0xf]
    %v78 = vld [vmem:[#allocation7 + $0x78] sm:$0xff]
    %v79 = vld [vmem:[#allocation7 + $0x80] sm:$0xff]
    %v80 = vld [vmem:[#allocation7 + $0x88] sm:$0xf]
    %v81 = vld [vmem:[#allocation7 + $0x8c] sm:$0xff]
    %v82 = vld [vmem:[#allocation7 + $0x94] sm:$0xff]
    %v83 = vld [vmem:[#allocation7 + $0x9c] sm:$0xf]
    %v84 = vld [vmem:[#allocation7 + $0xa0] sm:$0xff]
    %v85 = vld [vmem:[#allocation7 + $0xa8] sm:$0xff]
    %v86 = vld [vmem:[#allocation7 + $0xb0] sm:$0xf]
    %v87 = vld [vmem:[#allocation7 + $0xb4] sm:$0xff]
    %v88 = vld [vmem:[#allocation7 + $0xbc] sm:$0xff]
    %v89 = vld [vmem:[#allocation7 + $0xc4] sm:$0xf]
    %v90 = vld [vmem:[#allocation7 + $0xc8] sm:$0xff]
    %v91 = vld [vmem:[#allocation7 + $0xd0] sm:$0xff]
    %v92 = vld [vmem:[#allocation7 + $0xd8] sm:$0xf]
    %v93 = vld [vmem:[#allocation7 + $0xdc] sm:$0xff]
    %v94 = vld [vmem:[#allocation7 + $0xe4] sm:$0xff]
    %v95 = vld [vmem:[#allocation7 + $0xec] sm:$0xf]
    %v96 = vld [vmem:[#allocation7 + $0xf0] sm:$0xff]
    %v97 = vld [vmem:[#allocation7 + $0xf8] sm:$0xff]
    %v98 = vld [vmem:[#allocation7 + $0x100] sm:$0xf]
    %v99 = vld [vmem:[#allocation7 + $0x104] sm:$0xff]
    %v100 = vld [vmem:[#allocation7 + $0x10c] sm:$0xff]
    %v101 = vld [vmem:[#allocation7 + $0x114] sm:$0xf]
    %v102 = vld [vmem:[#allocation7 + $0x118] sm:$0xff]
    %v103 = vld [vmem:[#allocation7 + $0x120] sm:$0xff]
    %v104 = vld [vmem:[#allocation7 + $0x128] sm:$0xf]
    %v105 = vld [vmem:[#allocation7 + $0x12c] sm:$0xff]
    %v106 = vld [vmem:[#allocation7 + $0x134] sm:$0xff]
    %v107 = vld [vmem:[#allocation7 + $0x13c] sm:$0xf]
    %v108 = vld [vmem:[#allocation7 + $0x140] sm:$0xff]
    %v109 = vld [vmem:[#allocation7 + $0x148] sm:$0xff]
    %v110 = vld [vmem:[#allocation7 + $0x150] sm:$0xf]
    %v111 = vld [vmem:[#allocation7 + $0x154] sm:$0xff]
    %v112 = vld [vmem:[#allocation7 + $0x15c] sm:$0xff]
    %v113 = vld [vmem:[#allocation7 + $0x164] sm:$0xf]
    %v114 = vld [vmem:[#allocation7 + $0x168] sm:$0xff]
    %v115 = vld [vmem:[#allocation7 + $0x170] sm:$0xff]
    %v116 = vld [vmem:[#allocation7 + $0x178] sm:$0xf]
    %v117 = vld [vmem:[#allocation7 + $0x17c] sm:$0xff]
    %v118 = vld [vmem:[#allocation7 + $0x184] sm:$0xff]
    %v119 = vld [vmem:[#allocation7 + $0x18c] sm:$0xf]
    %v120 = vld [vmem:[#allocation7 + $0x190] sm:$0xff]
    %v121 = vld [vmem:[#allocation7 + $0x198] sm:$0xff]
    %v122 = vld [vmem:[#allocation7 + $0x1a0] sm:$0xf]
    %v123 = vld [vmem:[#allocation7 + $0x1a4] sm:$0xff]
    %v124 = vld [vmem:[#allocation7 + $0x1ac] sm:$0xff]
    %v125 = vld [vmem:[#allocation7 + $0x1b4] sm:$0xf]
    %v126 = vld [vmem:[#allocation7 + $0x1b8] sm:$0xff]
    %v127 = vld [vmem:[#allocation7 + $0x1c0] sm:$0xff]
    %v128 = vld [vmem:[#allocation7 + $0x1c8] sm:$0xf]
    %v129 = vld [vmem:[#allocation7 + $0x1cc] sm:$0xff]
    %v130 = vld [vmem:[#allocation7 + $0x1d4] sm:$0xff]
    %v131 = vld [vmem:[#allocation7 + $0x1dc] sm:$0xf]
    %v132 = vld [vmem:[%s3] sm:$0x1f]
    %v134 = vlaneseq
    %v135 = vshrl.u32 %v134, 7
    %v136 = vsub.s32 0, %v135
    %v137 = vrot.slane %v132, %v136
    %v138 = vlaneseq
    %v139 = vshrl.u32 %v138, 7
    %v140 = vsub.s32 1, %v139
    %v141 = vrot.slane %v132, %v140
    %v142 = vlaneseq
    %v143 = vshrl.u32 %v142, 7
    %v144 = vsub.s32 2, %v143
    %v145 = vrot.slane %v132, %v144
    %v146 = vlaneseq
    %v147 = vshrl.u32 %v146, 7
    %v148 = vsub.s32 3, %v147
    %v149 = vrot.slane %v132, %v148
    %v150 = vlaneseq
    %v151 = vshrl.u32 %v150, 7
    %v152 = vsub.s32 4, %v151
    %v153 = vrot.slane %v132, %v152
    %v160 = vunpack.c.l.b16 %v59
    %v161 = vunpack.c.h.b16 %v59
    %v162 = vpack.c.b16 %v160, %v160
    %v163 = vpack.c.b16 %v161, %v161
    %v237 = vunpack.c.l.b16 %v60
    %v238 = vunpack.c.h.b16 %v60
    %v239 = vunpack.c.l.b16 %v61
    %v240 = vunpack.c.h.b16 %v61
    %v241 = vunpack.c.l.b16 %v62
    %v242 = vunpack.c.l.b16 %v63
    %v243 = vunpack.c.h.b16 %v63
    %v244 = vunpack.c.l.b16 %v64
    %v245 = vunpack.c.h.b16 %v64
    %v246 = vunpack.c.l.b16 %v65
    %v247 = vunpack.c.l.b16 %v66
    %v248 = vunpack.c.h.b16 %v66
    %v249 = vunpack.c.l.b16 %v67
    %v250 = vunpack.c.h.b16 %v67
    %v251 = vunpack.c.l.b16 %v68
    %v252 = vunpack.c.l.b16 %v69
    %v253 = vunpack.c.h.b16 %v69
    %v254 = vunpack.c.l.b16 %v70
    %v255 = vunpack.c.h.b16 %v70
    %v256 = vunpack.c.l.b16 %v71
    %v257 = vunpack.c.l.b16 %v72
    %v258 = vunpack.c.h.b16 %v72
    %v259 = vunpack.c.l.b16 %v73
    %v260 = vunpack.c.h.b16 %v73
    %v261 = vunpack.c.l.b16 %v74
    %v262 = vunpack.c.l.b16 %v75
    %v263 = vunpack.c.h.b16 %v75
    %v264 = vunpack.c.l.b16 %v76
    %v265 = vunpack.c.h.b16 %v76
    %v266 = vunpack.c.l.b16 %v77
    %v267 = vunpack.c.l.b16 %v78
    %v268 = vunpack.c.h.b16 %v78
    %v269 = vunpack.c.l.b16 %v79
    %v270 = vunpack.c.h.b16 %v79
    %v271 = vunpack.c.l.b16 %v80
    %v272 = vunpack.c.l.b16 %v81
    %v273 = vunpack.c.h.b16 %v81
    %v274 = vunpack.c.l.b16 %v82
    %v275 = vunpack.c.h.b16 %v82
    %v276 = vunpack.c.l.b16 %v83
    %v277 = vunpack.c.l.b16 %v84
    %v278 = vunpack.c.h.b16 %v84
    %v279 = vunpack.c.l.b16 %v85
    %v280 = vunpack.c.h.b16 %v85
    %v281 = vunpack.c.l.b16 %v86
    %v282 = vunpack.c.l.b16 %v87
    %v283 = vunpack.c.h.b16 %v87
    %v284 = vunpack.c.l.b16 %v88
    %v285 = vunpack.c.h.b16 %v88
    %v286 = vunpack.c.l.b16 %v89
    %v287 = vunpack.c.l.b16 %v90
    %v288 = vunpack.c.h.b16 %v90
    %v289 = vunpack.c.l.b16 %v91
    %v290 = vunpack.c.h.b16 %v91
    %v291 = vunpack.c.l.b16 %v92
    %v292 = vunpack.c.l.b16 %v93
    %v293 = vunpack.c.h.b16 %v93
    %v294 = vunpack.c.l.b16 %v94
    %v295 = vunpack.c.h.b16 %v94
    %v296 = vunpack.c.l.b16 %v95
    %v297 = vunpack.c.l.b16 %v96
    %v298 = vunpack.c.h.b16 %v96
    %v299 = vunpack.c.l.b16 %v97
    %v300 = vunpack.c.h.b16 %v97
    %v301 = vunpack.c.l.b16 %v98
    %v302 = vunpack.c.l.b16 %v99
    %v303 = vunpack.c.h.b16 %v99
    %v304 = vunpack.c.l.b16 %v100
    %v305 = vunpack.c.h.b16 %v100
    %v306 = vunpack.c.l.b16 %v101
    %v307 = vunpack.c.l.b16 %v102
    %v308 = vunpack.c.h.b16 %v102
    %v309 = vunpack.c.l.b16 %v103
    %v310 = vunpack.c.h.b16 %v103
    %v311 = vunpack.c.l.b16 %v104
    %v312 = vunpack.c.l.b16 %v105
    %v313 = vunpack.c.h.b16 %v105
    %v314 = vunpack.c.l.b16 %v106
    %v315 = vunpack.c.h.b16 %v106
    %v316 = vunpack.c.l.b16 %v107
    %v317 = vunpack.c.l.b16 %v108
    %v318 = vunpack.c.h.b16 %v108
    %v319 = vunpack.c.l.b16 %v109
    %v320 = vunpack.c.h.b16 %v109
    %v321 = vunpack.c.l.b16 %v110
    %v322 = vunpack.c.l.b16 %v111
    %v323 = vunpack.c.h.b16 %v111
    %v324 = vunpack.c.l.b16 %v112
    %v325 = vunpack.c.h.b16 %v112
    %v326 = vunpack.c.l.b16 %v113
    %v327 = vunpack.c.l.b16 %v114
    %v328 = vunpack.c.h.b16 %v114
    %v329 = vunpack.c.l.b16 %v115
    %v330 = vunpack.c.h.b16 %v115
    %v331 = vunpack.c.l.b16 %v116
    %v332 = vunpack.c.l.b16 %v117
    %v333 = vunpack.c.h.b16 %v117
    %v334 = vunpack.c.l.b16 %v118
    %v335 = vunpack.c.h.b16 %v118
    %v336 = vunpack.c.l.b16 %v119
    %v337 = vunpack.c.l.b16 %v120
    %v338 = vunpack.c.h.b16 %v120
    %v339 = vunpack.c.l.b16 %v121
    %v340 = vunpack.c.h.b16 %v121
    %v341 = vunpack.c.l.b16 %v122
    %v342 = vunpack.c.l.b16 %v123
    %v343 = vunpack.c.h.b16 %v123
    %v344 = vunpack.c.l.b16 %v124
    %v345 = vunpack.c.h.b16 %v124
    %v346 = vunpack.c.l.b16 %v125
    %v347 = vunpack.c.l.b16 %v126
    %v348 = vunpack.c.h.b16 %v126
    %v349 = vunpack.c.l.b16 %v127
    %v350 = vunpack.c.h.b16 %v127
    %v351 = vunpack.c.l.b16 %v128
    %v352 = vunpack.c.l.b16 %v129
    %v353 = vunpack.c.h.b16 %v129
    %v354 = vunpack.c.l.b16 %v130
    %v355 = vunpack.c.h.b16 %v130
    %v356 = vunpack.c.l.b16 %v131
    %v357 = vpack.c.b16 %v242, %v237
    %v358 = vpack.c.b16 %v243, %v238
    %v359 = vpack.c.b16 %v244, %v239
    %v360 = vpack.c.b16 %v245, %v240
    %v361 = vpack.c.b16 %v246, %v241
    %v362 = vpack.c.b16 %v252, %v247
    %v363 = vpack.c.b16 %v253, %v248
    %v364 = vpack.c.b16 %v254, %v249
    %v365 = vpack.c.b16 %v255, %v250
    %v366 = vpack.c.b16 %v256, %v251
    %v367 = vpack.c.b16 %v262, %v257
    %v368 = vpack.c.b16 %v263, %v258
    %v369 = vpack.c.b16 %v264, %v259
    %v370 = vpack.c.b16 %v265, %v260
    %v371 = vpack.c.b16 %v266, %v261
    %v372 = vpack.c.b16 %v272, %v267
    %v373 = vpack.c.b16 %v273, %v268
    %v374 = vpack.c.b16 %v274, %v269
    %v375 = vpack.c.b16 %v275, %v270
    %v376 = vpack.c.b16 %v276, %v271
    %v377 = vpack.c.b16 %v282, %v277
    %v378 = vpack.c.b16 %v283, %v278
    %v379 = vpack.c.b16 %v284, %v279
    %v380 = vpack.c.b16 %v285, %v280
    %v381 = vpack.c.b16 %v286, %v281
    %v382 = vpack.c.b16 %v292, %v287
    %v383 = vpack.c.b16 %v293, %v288
    %v384 = vpack.c.b16 %v294, %v289
    %v385 = vpack.c.b16 %v295, %v290
    %v386 = vpack.c.b16 %v296, %v291
    %v387 = vpack.c.b16 %v302, %v297
    %v388 = vpack.c.b16 %v303, %v298
    %v389 = vpack.c.b16 %v304, %v299
    %v390 = vpack.c.b16 %v305, %v300
    %v391 = vpack.c.b16 %v306, %v301
    %v392 = vpack.c.b16 %v312, %v307
    %v393 = vpack.c.b16 %v313, %v308
    %v394 = vpack.c.b16 %v314, %v309
    %v395 = vpack.c.b16 %v315, %v310
    %v396 = vpack.c.b16 %v316, %v311
    %v397 = vpack.c.b16 %v322, %v317
    %v398 = vpack.c.b16 %v323, %v318
    %v399 = vpack.c.b16 %v324, %v319
    %v400 = vpack.c.b16 %v325, %v320
    %v401 = vpack.c.b16 %v326, %v321
    %v402 = vpack.c.b16 %v332, %v327
    %v403 = vpack.c.b16 %v333, %v328
    %v404 = vpack.c.b16 %v334, %v329
    %v405 = vpack.c.b16 %v335, %v330
    %v406 = vpack.c.b16 %v336, %v331
    %v407 = vpack.c.b16 %v342, %v337
    %v408 = vpack.c.b16 %v343, %v338
    %v409 = vpack.c.b16 %v344, %v339
    %v410 = vpack.c.b16 %v345, %v340
    %v411 = vpack.c.b16 %v346, %v341
    %v412 = vpack.c.b16 %v352, %v347
    %v413 = vpack.c.b16 %v353, %v348
    %v414 = vpack.c.b16 %v354, %v349
    %v415 = vpack.c.b16 %v355, %v350
    %v416 = vpack.c.b16 %v356, %v351
    %vm477 = vcmask 523264
    %v479 = vsel %vm477, %v163, 0
    %481 = vmatprep.subr.bf16.mxu0 %v358
    %482 = vmatpush1.bf16.msra.mxu0 %v357
    %483 = vmatprep.subr.bf16.mxu0 %v363
    %484 = vmatpush1.bf16.msra.mxu0 %v362
    %485 = vmatprep.subr.bf16.mxu0 %v368
    %486 = vmatpush1.bf16.msra.mxu0 %v367
    %487 = vmatprep.subr.bf16.mxu0 %v373
    %488 = vmatpush1.bf16.msra.mxu0 %v372
    %489 = vmatprep.subr.bf16.mxu0 %v378
    %490 = vmatpush1.bf16.msra.mxu0 %v377
    %491 = vmatprep.subr.bf16.mxu0 %v383
    %492 = vmatpush1.bf16.msra.mxu0 %v382
    %493 = vmatprep.subr.bf16.mxu0 %v388
    %494 = vmatpush1.bf16.msra.mxu0 %v387
    %495 = vmatprep.subr.bf16.mxu0 %v393
    %496 = vmatpush1.bf16.msra.mxu0 %v392
    %497 = vmatprep.subr.bf16.mxu0 %v398
    %498 = vmatpush1.bf16.msra.mxu0 %v397
    %499 = vmatprep.subr.bf16.mxu0 %v403
    %500 = vmatpush1.bf16.msra.mxu0 %v402
    %501 = vmatprep.subr.bf16.mxu0 %v408
    %502 = vmatpush1.bf16.msra.mxu0 %v407
    %503 = vmatprep.subr.bf16.mxu0 %v413
    %504 = vmatpush1.bf16.msra.mxu0 %v412
    %505 = vmatprep.subr.bf16.mxu0 0
    %506 = vmatpush1.bf16.msra.mxu0 0
    %507 = vmatprep.subr.bf16.mxu0 0
    %508 = vmatpush1.bf16.msra.mxu0 0
    %509 = vmatprep.subr.bf16.mxu0 0
    %510 = vmatpush1.bf16.msra.mxu0 0
    %511 = vmatprep.subr.bf16.mxu0 0
    %512 = vmatpush1.bf16.msra.mxu0 0
    %513 = vmatprep.mubr.bf16.mxu0 %v479
    %514 = vmatmul.mubr.bf16.gmra.mrb[0].mxu0 %v162
    %v515 = vpop.f32.mrb[0].mxu0
    %v516 = vadd.f32 %v137, %v515
    %v517 = vpop.f32.mrb[0].mxu0
    %v518 = vadd.f32 %v141, %v517
    %v519 = vpop.f32.mrb[0].mxu0
    %v520 = vpop.f32.mrb[0].mxu0
    %521 = vdwg.mxu0
    %522 = vmatprep.subr.bf16.mxu0 %v360
    %523 = vmatpush1.bf16.msra.mxu0 %v359
    %524 = vmatprep.subr.bf16.mxu0 %v365
    %525 = vmatpush1.bf16.msra.mxu0 %v364
    %526 = vmatprep.subr.bf16.mxu0 %v370
    %527 = vmatpush1.bf16.msra.mxu0 %v369
    %528 = vmatprep.subr.bf16.mxu0 %v375
    %529 = vmatpush1.bf16.msra.mxu0 %v374
    %530 = vmatprep.subr.bf16.mxu0 %v380
    %531 = vmatpush1.bf16.msra.mxu0 %v379
    %532 = vmatprep.subr.bf16.mxu0 %v385
    %533 = vmatpush1.bf16.msra.mxu0 %v384
    %534 = vmatprep.subr.bf16.mxu0 %v390
    %535 = vmatpush1.bf16.msra.mxu0 %v389
    %536 = vmatprep.subr.bf16.mxu0 %v395
    %537 = vmatpush1.bf16.msra.mxu0 %v394
    %538 = vmatprep.subr.bf16.mxu0 %v400
    %539 = vmatpush1.bf16.msra.mxu0 %v399
    %540 = vmatprep.subr.bf16.mxu0 %v405
    %541 = vmatpush1.bf16.msra.mxu0 %v404
    %542 = vmatprep.subr.bf16.mxu0 %v410
    %543 = vmatpush1.bf16.msra.mxu0 %v409
    %544 = vmatprep.subr.bf16.mxu0 %v415
    %545 = vmatpush1.bf16.msra.mxu0 %v414
    %546 = vmatprep.subr.bf16.mxu0 0
    %547 = vmatpush1.bf16.msra.mxu0 0
    %548 = vmatprep.subr.bf16.mxu0 0
    %549 = vmatpush1.bf16.msra.mxu0 0
    %550 = vmatprep.subr.bf16.mxu0 0
    %551 = vmatpush1.bf16.msra.mxu0 0
    %552 = vmatprep.subr.bf16.mxu0 0
    %553 = vmatpush1.bf16.msra.mxu0 0
    %554 = vmatprep.mubr.bf16.mxu0 %v479
    %555 = vmatmul.mubr.bf16.gmra.mrb[0].mxu0 %v162
    %v556 = vpop.f32.mrb[0].mxu0
    %v557 = vadd.f32 %v145, %v556
    %v558 = vpop.f32.mrb[0].mxu0
    %v559 = vadd.f32 %v149, %v558
    %v560 = vpop.f32.mrb[0].mxu0
    %v561 = vpop.f32.mrb[0].mxu0
    %562 = vdwg.mxu0
    %563 = vmatprep.subr.bf16.mxu0 0
    %564 = vmatpush1.bf16.msra.mxu0 %v361
    %565 = vmatprep.subr.bf16.mxu0 0
    %566 = vmatpush1.bf16.msra.mxu0 %v366
    %567 = vmatprep.subr.bf16.mxu0 0
    %568 = vmatpush1.bf16.msra.mxu0 %v371
    %569 = vmatprep.subr.bf16.mxu0 0
    %570 = vmatpush1.bf16.msra.mxu0 %v376
    %571 = vmatprep.subr.bf16.mxu0 0
    %572 = vmatpush1.bf16.msra.mxu0 %v381
    %573 = vmatprep.subr.bf16.mxu0 0
    %574 = vmatpush1.bf16.msra.mxu0 %v386
    %575 = vmatprep.subr.bf16.mxu0 0
    %576 = vmatpush1.bf16.msra.mxu0 %v391
    %577 = vmatprep.subr.bf16.mxu0 0
    %578 = vmatpush1.bf16.msra.mxu0 %v396
    %579 = vmatprep.subr.bf16.mxu0 0
    %580 = vmatpush1.bf16.msra.mxu0 %v401
    %581 = vmatprep.subr.bf16.mxu0 0
    %582 = vmatpush1.bf16.msra.mxu0 %v406
    %583 = vmatprep.subr.bf16.mxu0 0
    %584 = vmatpush1.bf16.msra.mxu0 %v411
    %585 = vmatprep.subr.bf16.mxu0 0
    %586 = vmatpush1.bf16.msra.mxu0 %v416
    %587 = vmatprep.subr.bf16.mxu0 0
    %588 = vmatpush1.bf16.msra.mxu0 0
    %589 = vmatprep.subr.bf16.mxu0 0
    %590 = vmatpush1.bf16.msra.mxu0 0
    %591 = vmatprep.subr.bf16.mxu0 0
    %592 = vmatpush1.bf16.msra.mxu0 0
    %593 = vmatprep.subr.bf16.mxu0 0
    %594 = vmatpush1.bf16.msra.mxu0 0
    %595 = vmatprep.mubr.bf16.mxu0 %v479
    %596 = vmatmul.mubr.bf16.gmra.mrb[0].mxu0 %v162
    %v597 = vpop.f32.mrb[0].mxu0
    %v598 = vadd.f32 %v153, %v597
    %v599 = vpop.f32.mrb[0].mxu0
    %v600 = vpop.f32.mrb[0].mxu0
    %v601 = vpop.f32.mrb[0].mxu0
    %602 = vdwg.mxu0
    %v603 = vxor.u32 %v516, 2147483648
    %v604 = vmul.f32 %v603, 1.442695
    %v605 = vpow.pop %v604
    %v606 = vadd.f32 %v605, 1.0
    %v607 = vrcp.pop %v606
    %v608 = vmul.f32 1.0, %v607
    %v609 = vxor.u32 %v518, 2147483648
    %v610 = vmul.f32 %v609, 1.442695
    %v611 = vpow.pop %v610
    %v612 = vadd.f32 %v611, 1.0
    %v613 = vrcp.pop %v612
    %v614 = vmul.f32 1.0, %v613
    %v615 = vxor.u32 %v557, 2147483648
    %v616 = vmul.f32 %v615, 1.442695
    %v617 = vpow.pop %v616
    %v618 = vadd.f32 %v617, 1.0
    %v619 = vrcp.pop %v618
    %v620 = vmul.f32 1.0, %v619
    %v621 = vmax.f32 %v559, %v598
    %v622 = vld [vmem:[#allocation5] sm:$0xff]
    %v623 = vmul.f32 %v614, %v622
    %v624 = vmul.f32 %v608, %v621
    %v625 = vadd.f32 %v623, %v624
    %v626 = vtanh.pop %v625
    %v627 = vmul.f32 %v620, %v626
    %628 = vst [vmem:[#allocation8] sm:$0xff] %v627
    %629 = vst [vmem:[#allocation9] sm:$0xff] %v625
    // Predicated region
    $region30: #{tpu_custom_call.1} parent=1 // pred_check
      _
    $region31: #{tpu_custom_call.1} parent=1 // pred_check_branch
      %631 = sbr.rel (0) target = $region33
    $region32: #{tpu_custom_call.1} parent=1 // pred_region
      %s633 = ssub.s32 128, 128
      %634 = vsyncadd [#allocation4], %s633
      %s636 = sshll.u32 [#allocation8], 4
      %s637 = int_to_ptr.vmem [resolvable:$true] %s636
      %639 = dma.vmem_to_hbm [thread:$0]  %s637, 128, %s4, [#allocation4]
    $region33: #{tpu_custom_call.1} parent=1 // pred_fallthru
      _
    // Predicated region
    $region34: #{tpu_custom_call.1} parent=1 // pred_check
      _
    $region35: #{tpu_custom_call.1} parent=1 // pred_check_branch
      %641 = sbr.rel (0) target = $region37
    $region36: #{tpu_custom_call.1} parent=1 // pred_region
      %s643 = ssub.s32 128, 128
      %644 = vsyncadd [#allocation10], %s643
      %s646 = sshll.u32 [#allocation9], 4
      %s647 = int_to_ptr.vmem [resolvable:$true] %s646
      %649 = dma.vmem_to_hbm [thread:$0]  %s647, 128, %s5, [#allocation10]
    $region37: #{tpu_custom_call.1} parent=1 // pred_fallthru
      _
    // Predicated region
    $region38: #{tpu_custom_call.1} parent=1 // pred_check
      _
    $region39: #{tpu_custom_call.1} parent=1 // pred_check_branch
      %651 = sbr.rel (0) target = $region41
    $region40: #{tpu_custom_call.1} parent=1 // pred_region
      %652 = dma.done [#allocation4], 128
    $region41: #{tpu_custom_call.1} parent=1 // pred_fallthru
      _
    // Predicated region
    $region42: #{tpu_custom_call.1} parent=1 // pred_check
      _
    $region43: #{tpu_custom_call.1} parent=1 // pred_check_branch
      %654 = sbr.rel (0) target = $region45
    $region44: #{tpu_custom_call.1} parent=1 // pred_region
      %655 = dma.done [#allocation10], 128
    $region45: #{tpu_custom_call.1} parent=1 // pred_fallthru
      _
    %656 = vsyncpa [#allocation3], 1
    %657 = vsyncpa [#allocation6], 1
    %658 = vsyncpa [#allocation4], 1
    %659 = vsyncpa [#allocation10], 1

</llo_original>
